<compile_context>
chip_gen: v7x
topology: tpu7x:2x2x1
jax: 0.10.0
libtpu: 0.0.40
codegen_flags: <defaults>
</compile_context>

<pallas_src>
import jax
import jax.numpy as jnp
from jax.experimental import pallas as pl
from jax.experimental.pallas import tpu as pltpu


def _round_up(x, m):
    return ((x + m - 1) // m) * m


def _vmem_budget_bytes():
    """3/4 of per-core VMEM capacity; conservative fallback if the query fails."""
    try:
        info = pltpu.get_tpu_info()
        cap = int(getattr(info, "vmem_capacity_bytes", 0) or 0)
    except Exception:
        cap = 0
    if cap <= 0:
        cap = 64 * 1024 * 1024  # v7x per-TensorCore VMEM (smallest of the generations)
    return min((cap * 3) // 4, 96 * 1024 * 1024)


def _choose_batch_tile(B, S, F, budget_bytes, target_grid_steps=2):
    """Largest batch tile whose padded, double-buffered blocks fit the VMEM budget.

    Uses padded block sizes (second-to-last dim -> multiple of 8, last dim ->
    multiple of 128) and counts the double-buffer factor exactly once.
    """
    s_pad = _round_up(S, 8)
    f_pad = _round_up(F, 128)
    bytes_per_row = 4 * (
        2 * s_pad * f_pad      # double-buffered x input block (padded)
        + 2 * f_pad            # double-buffered output block (padded)
        + 2 * s_pad * f_pad    # in-kernel temporaries: x value + (TB,S,F) product
    )
    tb = max(1, budget_bytes // bytes_per_row)
    tb = min(tb, 1024)  # diminishing returns past ~1K leading rows
    # Aim for >= target_grid_steps grid steps so DMA of step i+1 overlaps compute
    # and writeback of step i, and both v7x TensorCores get grid steps.
    tb = min(tb, max(1, pl.cdiv(B, target_grid_steps)))
    if tb >= B:
        return B
    if tb >= 8:
        return (tb // 8) * 8  # keep (TB, F) output blocks sublane-aligned
    # Tiny batches (or tiny budgets): either take the whole batch (block dims
    # equal full array dims, so the (8,128) rule is satisfied) or fall back to
    # a minimal 8-row tile; the tail block is masked on writeback.
    return B if B <= 8 else 8


def attention_kernel(x_ref, w_ref, b_ref, o_ref):
    # x_ref: (TB, S, F)  streamed batch tile (native dtype), VMEM
    # w_ref: (1, F)      resident lane-major projection weight, f32, VMEM
    # b_ref: (1, S)      resident per-step bias, f32, VMEM
    # o_ref: (TB, F)     natural-width output block (masked store for F < 128)
    xf = x_ref[...].astype(jnp.float32)            # (TB, S, F) compute in f32
    w = w_ref[...]                                 # (1, F) free lane-major broadcast
    b = b_ref[...]                                 # (1, S)

    # Pass 1 (vectorized over steps): scores, tanh, exp, row-normalization.
    e = jnp.sum(xf * w, axis=-1)                   # (TB, S)  one lane reduce
    a = jnp.exp(jnp.tanh(e + b))                   # (TB, S)  one tanh + one exp
    row_sum = jnp.sum(a, axis=-1, keepdims=True)   # (TB, 1)
    # Exact reciprocal (approx=True would use EUP vrcp but break 1e-5 tolerance).
    coef = a * pl.reciprocal(row_sum) + 1e-10      # matches torch: a/sum + 1e-10

    # Pass 2: fused weighted reduction over the step (sublane) axis.
    out = jnp.sum(xf * coef[:, :, None], axis=1)   # (TB, F)
    o_ref[...] = out.astype(o_ref.dtype)


def attention_forward(x, weight, bias):
    """x: (B, S, F), weight: (F, 1), bias: (S,)  ->  (B, F) in x.dtype."""
    B, S, F = x.shape
    w_row = weight.reshape(1, F).astype(jnp.float32)   # lane-major layout
    b_row = bias.reshape(1, S).astype(jnp.float32)

    vmem_limit = _vmem_budget_bytes()
    TB = _choose_batch_tile(B, S, F, vmem_limit, target_grid_steps=2)
    grid = (pl.cdiv(B, TB),)

    return pl.pallas_call(
        attention_kernel,
        grid=grid,
        out_shape=jax.ShapeDtypeStruct((B, F), x.dtype),
        in_specs=[
            pl.BlockSpec((TB, S, F), lambda i: (i, 0, 0)),   # streamed x tile
            pl.BlockSpec((1, F), lambda i: (0, 0)),          # resident weight
            pl.BlockSpec((1, S), lambda i: (0, 0)),          # resident bias
        ],
        out_specs=pl.BlockSpec((TB, F), lambda i: (i, 0)),
        compiler_params=pltpu.CompilerParams(
            dimension_semantics=("parallel",),  # independent rows: v7x uses both TCs
            vmem_limit_bytes=int(vmem_limit),
        ),
    )(x, w_row, b_row)


def attention_reference(x, weight, bias):
    """Pure-JAX reference mirroring the PyTorch forward (mask=None path)."""
    B, S, F = x.shape
    eij = (x.reshape(-1, F) @ weight).reshape(-1, S) + bias
    eij = jnp.tanh(eij)
    a = jnp.exp(eij)
    a = a / jnp.sum(a, axis=1, keepdims=True) + 1e-10
    return jnp.sum(x * a[:, :, None], axis=1)


if __name__ == "__main__":
    # Small shapes consistent with the module: batch=2, step_dim=8, feature_dim=32.
    B, S, F = 2, 8, 32

    key = jax.random.PRNGKey(0)
    kx, kw, kb = jax.random.split(key, 3)

    x = jax.random.normal(kx, (B, S, F), dtype=jnp.float32)

    # Weight init matching the module (xavier_uniform_ on zeros(feature_dim, 1)).
    xavier_bound = (6.0 / (F + 1)) ** 0.5
    weight = jax.random.uniform(
        kw, (F, 1), minval=-xavier_bound, maxval=xavier_bound, dtype=jnp.float32
    )
    # The module initializes b to zeros; use a small nonzero bias here so the
    # bias path is actually exercised by the correctness check.
    bias = 0.1 * jax.random.normal(kb, (S,), dtype=jnp.float32)

    out = attention_forward(x, weight, bias)
    out = jax.block_until_ready(out)

    ref = attention_reference(x, weight, bias)
    assert out.shape == (B, F)
    assert jnp.allclose(out, ref, atol=1e-5, rtol=1e-5), "mismatch vs reference"

    print("KERNEL_OK")
</pallas_src>

<mosaic_0001>
module attributes {stable_mosaic.version = 11 : i64} {
  func.func @attention_kernel(%arg0: i32, %arg1: memref<2x8x32xf32, #tpu.memory_space<vmem>>, %arg2: memref<1x32xf32, #tpu.memory_space<vmem>>, %arg3: memref<1x8xf32, #tpu.memory_space<vmem>>, %arg4: memref<2x32xf32, #tpu.memory_space<vmem>>) attributes {dimension_semantics = [#tpu.dimension_semantics<parallel>], iteration_bounds = array<i64: 1>, scalar_prefetch = 0 : i64, scratch_operands = 0 : i64, tpu.core_type = #tpu.core_type<tc>, window_params = [{transform_indices = @transform_0, window_bounds = array<i64: 2, 8, 32>}, {pipeline_mode = #tpu.pipeline_mode<synchronous>, transform_indices = @transform_1, window_bounds = array<i64: 1, 32>}, {pipeline_mode = #tpu.pipeline_mode<synchronous>, transform_indices = @transform_2, window_bounds = array<i64: 1, 8>}, {transform_indices = @transform_3, window_bounds = array<i64: 2, 32>}]} {
    %c0 = arith.constant 0 : index
    %c0_0 = arith.constant 0 : index
    %c0_1 = arith.constant 0 : index
    %0 = vector.load %arg1[%c0, %c0_0, %c0_1] : memref<2x8x32xf32, #tpu.memory_space<vmem>>, vector<2x8x32xf32>
    %c0_2 = arith.constant 0 : index
    %c0_3 = arith.constant 0 : index
    %1 = vector.load %arg2[%c0_2, %c0_3] : memref<1x32xf32, #tpu.memory_space<vmem>>, vector<1x32xf32>
    %c0_4 = arith.constant 0 : index
    %c0_5 = arith.constant 0 : index
    %2 = vector.load %arg3[%c0_4, %c0_5] : memref<1x8xf32, #tpu.memory_space<vmem>>, vector<1x8xf32>
    %3 = vector.shape_cast %1 : vector<1x32xf32> to vector<1x1x32xf32>
    %4 = vector.broadcast %3 : vector<1x1x32xf32> to vector<2x8x32xf32>
    %5 = arith.mulf %0, %4 : vector<2x8x32xf32>
    %cst = arith.constant dense<0.000000e+00> : vector<2x8xf32>
    %6 = vector.multi_reduction <add>, %5, %cst [2] : vector<2x8x32xf32> to vector<2x8xf32>
    %7 = vector.broadcast %2 : vector<1x8xf32> to vector<2x8xf32>
    %8 = arith.addf %6, %7 : vector<2x8xf32>
    %9 = math.tanh %8 : vector<2x8xf32>
    %10 = math.exp %9 : vector<2x8xf32>
    %cst_6 = arith.constant dense<0.000000e+00> : vector<2xf32>
    %11 = vector.multi_reduction <add>, %10, %cst_6 [1] : vector<2x8xf32> to vector<2xf32>
    %12 = vector.shape_cast %11 : vector<2xf32> to vector<2x1xf32>
    %13 = tpu.reciprocal %12 : vector<2x1xf32> -> vector<2x1xf32>
    %14 = vector.broadcast %13 : vector<2x1xf32> to vector<2x8xf32>
    %15 = arith.mulf %10, %14 : vector<2x8xf32>
    %cst_7 = arith.constant 1.000000e-10 : f32
    %16 = vector.broadcast %cst_7 : f32 to vector<2x8xf32>
    %17 = arith.addf %15, %16 : vector<2x8xf32>
    %18 = vector.shape_cast %17 : vector<2x8xf32> to vector<2x8x1xf32>
    %19 = vector.broadcast %18 : vector<2x8x1xf32> to vector<2x8x32xf32>
    %20 = arith.mulf %0, %19 : vector<2x8x32xf32>
    %cst_8 = arith.constant dense<0.000000e+00> : vector<2x32xf32>
    %21 = vector.multi_reduction <add>, %20, %cst_8 [1] : vector<2x8x32xf32> to vector<2x32xf32>
    %c0_9 = arith.constant 0 : index
    %c0_10 = arith.constant 0 : index
    %22 = vector.load %arg4[%c0_9, %c0_10] : memref<2x32xf32, #tpu.memory_space<vmem>>, vector<2x32xf32>
    tpu.vector_store %arg4[%c0_9, %c0_10], %21 {strides = array<i32>} : memref<2x32xf32, #tpu.memory_space<vmem>>, vector<2x32xf32>,
    return
  }
  func.func @transform_0(%arg0: i32) -> (i32, i32, i32) {
    %c0_i32 = arith.constant 0 : i32
    %c0_i32_0 = arith.constant 0 : i32
    %c0_i32_1 = arith.constant 0 : i32
    return %arg0, %c0_i32, %c0_i32_0 : i32, i32, i32
  }
  func.func @transform_1(%arg0: i32) -> (i32, i32) {
    %c0_i32 = arith.constant 0 : i32
    %c0_i32_0 = arith.constant 0 : i32
    %c0_i32_1 = arith.constant 0 : i32
    return %c0_i32, %c0_i32_0 : i32, i32
  }
  func.func @transform_2(%arg0: i32) -> (i32, i32) {
    %c0_i32 = arith.constant 0 : i32
    %c0_i32_0 = arith.constant 0 : i32
    %c0_i32_1 = arith.constant 0 : i32
    return %c0_i32, %c0_i32_0 : i32, i32
  }
  func.func @transform_3(%arg0: i32) -> (i32, i32) {
    %c0_i32 = arith.constant 0 : i32
    %c0_i32_0 = arith.constant 0 : i32
    return %arg0, %c0_i32 : i32, i32
  }
}

</mosaic_0001>

<llo_original>
// kernel: tpu_custom_call.1
$region0: #{tpu_custom_call.1}
  #allocation0 [shape = 'u32[]', space=smem, size = 0x4, offset = 0x4, fixed_abs, tag = 'smem constant byte address 0x4 - core index']
  #allocation1 [shape = 'u32[144,128]{1,0:T(1,128)}', space=vmem, size = 0x12000, scoped, tag = 'internal scratch']
  %s0 = inlined_call_operand.hbm [shape: f32[2,8,32], index: 0, kind: input, shape index: {}]
  %s1 = inlined_call_operand.vmem [shape: f32[1,32], index: 1, kind: input, shape index: {}]
  %s2 = inlined_call_operand.vmem [shape: f32[1,8], index: 2, kind: input, shape index: {}]
  %s3 = inlined_call_operand.hbm [shape: f32[2,32], index: 3, kind: output, shape index: {}]
  %s4 = sld [smem:[#allocation0]]
  $region26: #{tpu_custom_call.1} parent=0
    _
  %s6 = ssub.s32 1, %s4
  %s7 = scalar_select 0, %s6, %s4
  $region1: #{tpu_custom_call.1} parent=0
    #allocation2 [shape = 'u8[8192]{0}', space=vmem, size = 0x2000, scoped, tag = 'input window, operand 0, single buffered']
    #allocation3 [shape = 's32[1]{0}', space=sflag, size = 0x4, scoped, tag = 'scoped memory for tpu_custom_call.1']
    #allocation4 [shape = 's32[1]{0}', space=sflag, size = 0x4, scoped, tag = 'scoped memory for tpu_custom_call.1']
    #allocation5 [shape = 'u8[1024]{0}', space=vmem, size = 0x400, scoped, tag = 'output window, operand 0, single buffered']
    %8 = vsyncpa [#allocation3], 0
    %9 = vsyncpa [#allocation4], 0
    // Predicated region
    $region2: #{tpu_custom_call.1} parent=1 // pred_check
      _
    $region3: #{tpu_custom_call.1} parent=1 // pred_check_branch
      %11 = sbr.rel (0) target = $region5
    $region4: #{tpu_custom_call.1} parent=1 // pred_region
      %s13 = ssub.s32 256, 256
      %14 = vsyncadd [#allocation3], %s13
      %s15 = sshll.u32 [#allocation2], 4
      %s16 = int_to_ptr.vmem [resolvable:$true] %s15
      %21 = dma.hbm_to_vmem [thread:$0]  %s0, 256, %s16, [#allocation3], 128, 128, 8
    $region5: #{tpu_custom_call.1} parent=1 // pred_fallthru
      _
    // Predicated region
    $region6: #{tpu_custom_call.1} parent=1 // pred_check
      _
    $region7: #{tpu_custom_call.1} parent=1 // pred_check_branch
      %23 = sbr.rel (0) target = $region9
    $region8: #{tpu_custom_call.1} parent=1 // pred_region
      _
    $region9: #{tpu_custom_call.1} parent=1 // pred_fallthru
      _
    // Predicated region
    $region10: #{tpu_custom_call.1} parent=1 // pred_check
      _
    $region11: #{tpu_custom_call.1} parent=1 // pred_check_branch
      %25 = sbr.rel (0) target = $region13
    $region12: #{tpu_custom_call.1} parent=1 // pred_region
      _
    $region13: #{tpu_custom_call.1} parent=1 // pred_fallthru
      _
    // Predicated region
    $region14: #{tpu_custom_call.1} parent=1 // pred_check
      _
    $region15: #{tpu_custom_call.1} parent=1 // pred_check_branch
      %27 = sbr.rel (0) target = $region17
    $region16: #{tpu_custom_call.1} parent=1 // pred_region
      %28 = dma.done [#allocation3], 256
    $region17: #{tpu_custom_call.1} parent=1 // pred_fallthru
      _
    %v29 = vld [vmem:[#allocation2] sm:$0xff]
    %v30 = vld [vmem:[#allocation2 + $0x8] sm:$0xff]
    %v31 = vld [vmem:[%s1] sm:$0x1]
    %v32 = vld [vmem:[%s2] sm:$0x1]
    %v34 = vlaneseq
    %v35 = vshrl.u32 %v34, 7
    %v36 = vsub.s32 0, %v35
    %v37 = vrot.slane %v31, %v36
    %v39 = vmul.f32 %v29, %v37
    %v40 = vmul.f32 %v30, %v37
    %vm41 = vcmask 261120
    %v42 = vsel %vm41, %v39, 0.0
    %43 = vadd.xlane.f32.xlu0 %v42
    %v44 = vpop.xlane.xlu0 %43
    %v45 = vsel %vm41, %v40, 0.0
    %46 = vadd.xlane.f32.xlu0 %v45
    %v47 = vpop.xlane.xlu0 %46
    %v49 = vlaneseq
    %v50 = vshrl.u32 %v49, 7
    %v51 = vsub.s32 0, %v50
    %v52 = vrot.slane %v32, %v51
    %54 = vbcast.lane.b32.xlu0 %v52, 256
    %v55 = vpop.permute.xlu0 %54
    %v57 = vadd.f32 %v44, %v55
    %v58 = vadd.f32 %v47, %v55
    %v59 = vtanh.pop %v57
    %v60 = vtanh.pop %v58
    %v61 = vmul.f32 %v59, 1.442695
    %v62 = vpow.pop %v61
    %v63 = vmul.f32 %v60, 1.442695
    %v64 = vpow.pop %v63
    %67 = vset.pattern.permute.xlu0 0
    %68 = vperm.xlu0 %67, %v62
    %v69 = vpop.permute.xlu0 %68
    %70 = vset.pattern.permute.xlu0 0
    %71 = vperm.xlu0 %70, %v64
    %v72 = vpop.permute.xlu0 %71
    %v73 = vlaneseq
    %v74 = vand.u32 %v73, 127
    %v75 = vlaneseq
    %v76 = vshrl.u32 %v75, 7
    %v77 = vsub.s32 %v74, %v76
    %v78 = vrot.slane %v69, %v77
    %v79 = vlaneseq
    %v80 = vshrl.u32 %v79, 7
    %v81 = vsub.s32 %v74, %v80
    %v82 = vrot.slane %v72, %v81
    %vm83 = vcmask 1041409
    %v84 = vsel %vm83, %v82, %v78
    %vm86 = vcmask 58368
    %v87 = vsel %vm86, %v84, 0.0
    %88 = vadd.xlane.f32.xlu0 %v87
    %v89 = vpop.xlane.xlu0 %88
    %v90 = vrcp.pop %v89
    %v92 = vlaneseq
    %v93 = vshrl.u32 %v92, 7
    %v94 = vsub.s32 0, %v93
    %v95 = vrot.slane %v90, %v94
    %v96 = vlaneseq
    %v97 = vshrl.u32 %v96, 7
    %v98 = vsub.s32 1, %v97
    %v99 = vrot.slane %v90, %v98
    %v102 = vmul.f32 %v62, %v95
    %v103 = vmul.f32 %v64, %v99
    %v104 = vadd.f32 %v102, 1e-10
    %v105 = vadd.f32 %v103, 1e-10
    %107 = vset.pattern.permute.xlu0 0
    %108 = vperm.xlu0 %107, %v104
    %v109 = vpop.permute.xlu0 %108
    %112 = vset.pattern.permute.xlu0 0
    %113 = vperm.xlu0 %112, %v105
    %v114 = vpop.permute.xlu0 %113
    %v116 = vmul.f32 %v29, %v109
    %v117 = vmul.f32 %v30, %v114
    %v118 = vsel %vm41, %v116, 0.0
    %v119 = vrot.slane %v118, 4
    %v120 = vadd.f32 %v118, %v119
    %v121 = vrot.slane %v120, 2
    %v122 = vadd.f32 %v120, %v121
    %v123 = vrot.slane %v122, 1
    %v124 = vadd.f32 %v122, %v123
    %v125 = vsel %vm41, %v117, 0.0
    %v126 = vrot.slane %v125, 4
    %v127 = vadd.f32 %v125, %v126
    %v128 = vrot.slane %v127, 2
    %v129 = vadd.f32 %v127, %v128
    %v130 = vrot.slane %v129, 1
    %v131 = vadd.f32 %v129, %v130
    %v134 = vsel %vm83, %v131, %v124
    %vm136 = vcmask 254976
    %137 = vst.msk [vmem:[#allocation5] sm:$0x3] %vm136, %v134
    // Predicated region
    $region18: #{tpu_custom_call.1} parent=1 // pred_check
      _
    $region19: #{tpu_custom_call.1} parent=1 // pred_check_branch
      %139 = sbr.rel (0) target = $region21
    $region20: #{tpu_custom_call.1} parent=1 // pred_region
      %s141 = ssub.s32 32, 32
      %142 = vsyncadd [#allocation4], %s141
      %s144 = sshll.u32 [#allocation5], 4
      %s145 = int_to_ptr.vmem [resolvable:$true] %s144
      %147 = dma.vmem_to_hbm [thread:$0]  %s145, 32, %s3, [#allocation4]
    $region21: #{tpu_custom_call.1} parent=1 // pred_fallthru
      _
    // Predicated region
    $region22: #{tpu_custom_call.1} parent=1 // pred_check
      _
    $region23: #{tpu_custom_call.1} parent=1 // pred_check_branch
      %149 = sbr.rel (0) target = $region25
    $region24: #{tpu_custom_call.1} parent=1 // pred_region
      %150 = dma.done [#allocation4], 32
    $region25: #{tpu_custom_call.1} parent=1 // pred_fallthru
      _
    %151 = vsyncpa [#allocation3], 1
    %152 = vsyncpa [#allocation4], 1

</llo_original>
